<compile_context>
chip_gen: v7x
topology: tpu7x:2x2x1
jax: 0.10.0
libtpu: 0.0.40
codegen_flags: <defaults>
</compile_context>

<pallas_src>
import jax
import jax.numpy as jnp
from jax.experimental import pallas as pl
from jax.experimental.pallas import tpu as pltpu

# Problem sizes (the module's globals D_in, D_H1, D_H2, D_H3, D_out)
B     = 8
D_IN  = 32
D_H1  = 64
D_H2  = 64
D_H3  = 32
D_OUT = 8

LANE = 128  # lane-dense output width (final layer zero-padded to this)


def mlp_relu_kernel(x_ref,
                    w1_ref, b1_ref,
                    w2_ref, b2_ref,
                    w3_ref, b3_ref,
                    w4p_ref, b4p_ref,
                    o_ref):
    # Everything for one batch tile fits in VMEM: fuse all 4 matmuls + acts.
    x = x_ref[...]
    h1 = jnp.maximum(
        jnp.dot(x, w1_ref[...], preferred_element_type=jnp.float32) + b1_ref[...],
        0.0)
    h2 = jnp.maximum(
        jnp.dot(h1, w2_ref[...], preferred_element_type=jnp.float32) + b2_ref[...],
        0.0)
    h3 = jnp.maximum(
        jnp.dot(h2, w3_ref[...], preferred_element_type=jnp.float32) + b3_ref[...],
        0.0)
    # Final layer is padded to 128 output lanes -> unmasked, lane-dense store.
    a4 = jnp.dot(h3, w4p_ref[...], preferred_element_type=jnp.float32) + b4p_ref[...]
    o_ref[...] = jax.nn.sigmoid(a4).astype(o_ref.dtype)  # exp on EUP slot


def _round_up(n, m):
    return (n + m - 1) // m * m


def net_relu_forward(x, params, *, block_b=128):
    """Fused Pallas forward pass of NetRelu. x: (B, D_IN) float32."""
    (w1, b1), (w2, b2), (w3, b3), (w4, b4) = params
    b_in = x.shape[0]

    # Lane-dense output trick: zero-pad final layer to 128 output columns.
    w4p = jnp.zeros((D_H3, LANE), jnp.float32).at[:, :D_OUT].set(w4)
    b4p = jnp.zeros((1, LANE), jnp.float32).at[:, :D_OUT].set(b4)

    # Batch tile: sublane-aligned (multiple of 8); grid over batch so large
    # batches amortize call overhead and can shard across TensorCores.
    tb = min(block_b, _round_up(b_in, 8))
    b_pad = _round_up(b_in, tb)
    xp = jnp.zeros((b_pad, D_IN), jnp.float32).at[:b_in].set(x)

    const2 = lambda shape: pl.BlockSpec(shape, lambda i: (0, 0))  # VMEM-resident

    y_pad = pl.pallas_call(
        mlp_relu_kernel,
        out_shape=jax.ShapeDtypeStruct((b_pad, LANE), jnp.float32),
        grid=(b_pad // tb,),
        in_specs=[
            pl.BlockSpec((tb, D_IN), lambda i: (i, 0)),   # x: tiled over batch
            const2((D_IN, D_H1)),  const2((1, D_H1)),     # weights/biases: constant
            const2((D_H1, D_H2)),  const2((1, D_H2)),
            const2((D_H2, D_H3)),  const2((1, D_H3)),
            const2((D_H3, LANE)),  const2((1, LANE)),
        ],
        out_specs=pl.BlockSpec((tb, LANE), lambda i: (i, 0)),
        compiler_params=pltpu.CompilerParams(
            dimension_semantics=("parallel",)),
    )(xp, w1, b1, w2, b2, w3, b3, w4p, b4p)

    return y_pad[:b_in, :D_OUT]


def init_linear(key, fan_in, fan_out):
    # PyTorch nn.Linear default init: U(-1/sqrt(fan_in), 1/sqrt(fan_in))
    kw, kb = jax.random.split(key)
    bound = 1.0 / jnp.sqrt(fan_in)
    w = jax.random.uniform(kw, (fan_in, fan_out), jnp.float32, -bound, bound)
    b = jax.random.uniform(kb, (1, fan_out), jnp.float32, -bound, bound)
    return w, b


def reference_forward(x, params):
    (w1, b1), (w2, b2), (w3, b3), (w4, b4) = params
    h = jnp.maximum(x @ w1 + b1, 0.0)
    h = jnp.maximum(h @ w2 + b2, 0.0)
    h = jnp.maximum(h @ w3 + b3, 0.0)
    return jax.nn.sigmoid(h @ w4 + b4)


if __name__ == "__main__":
    key = jax.random.PRNGKey(0)
    kx, k1, k2, k3, k4 = jax.random.split(key, 5)

    x = jax.random.normal(kx, (B, D_IN), jnp.float32)
    params = (
        init_linear(k1, D_IN, D_H1),
        init_linear(k2, D_H1, D_H2),
        init_linear(k3, D_H2, D_H3),
        init_linear(k4, D_H3, D_OUT),
    )

    y = net_relu_forward(x, params)
    y = jax.block_until_ready(y)

    y_ref = reference_forward(x, params)
    assert y.shape == (B, D_OUT)
    assert jnp.allclose(y, y_ref, atol=1e-5, rtol=1e-5)

    print("KERNEL_OK")
</pallas_src>

<mosaic_0001>
module attributes {stable_mosaic.version = 11 : i64} {
  func.func @mlp_relu_kernel(%arg0: i32, %arg1: memref<8x32xf32, #tpu.memory_space<vmem>>, %arg2: memref<32x64xf32, #tpu.memory_space<vmem>>, %arg3: memref<1x64xf32, #tpu.memory_space<vmem>>, %arg4: memref<64x64xf32, #tpu.memory_space<vmem>>, %arg5: memref<1x64xf32, #tpu.memory_space<vmem>>, %arg6: memref<64x32xf32, #tpu.memory_space<vmem>>, %arg7: memref<1x32xf32, #tpu.memory_space<vmem>>, %arg8: memref<32x128xf32, #tpu.memory_space<vmem>>, %arg9: memref<1x128xf32, #tpu.memory_space<vmem>>, %arg10: memref<8x128xf32, #tpu.memory_space<vmem>>) attributes {dimension_semantics = [#tpu.dimension_semantics<parallel>], iteration_bounds = array<i64: 1>, scalar_prefetch = 0 : i64, scratch_operands = 0 : i64, tpu.core_type = #tpu.core_type<tc>, window_params = [{transform_indices = @transform_0, window_bounds = array<i64: 8, 32>}, {pipeline_mode = #tpu.pipeline_mode<synchronous>, transform_indices = @transform_1, window_bounds = array<i64: 32, 64>}, {pipeline_mode = #tpu.pipeline_mode<synchronous>, transform_indices = @transform_2, window_bounds = array<i64: 1, 64>}, {pipeline_mode = #tpu.pipeline_mode<synchronous>, transform_indices = @transform_3, window_bounds = array<i64: 64, 64>}, {pipeline_mode = #tpu.pipeline_mode<synchronous>, transform_indices = @transform_4, window_bounds = array<i64: 1, 64>}, {pipeline_mode = #tpu.pipeline_mode<synchronous>, transform_indices = @transform_5, window_bounds = array<i64: 64, 32>}, {pipeline_mode = #tpu.pipeline_mode<synchronous>, transform_indices = @transform_6, window_bounds = array<i64: 1, 32>}, {pipeline_mode = #tpu.pipeline_mode<synchronous>, transform_indices = @transform_7, window_bounds = array<i64: 32, 128>}, {pipeline_mode = #tpu.pipeline_mode<synchronous>, transform_indices = @transform_8, window_bounds = array<i64: 1, 128>}, {transform_indices = @transform_9, window_bounds = array<i64: 8, 128>}]} {
    %c0 = arith.constant 0 : index
    %c0_0 = arith.constant 0 : index
    %0 = vector.load %arg1[%c0, %c0_0] : memref<8x32xf32, #tpu.memory_space<vmem>>, vector<8x32xf32>
    %c0_1 = arith.constant 0 : index
    %c0_2 = arith.constant 0 : index
    %1 = vector.load %arg2[%c0_1, %c0_2] : memref<32x64xf32, #tpu.memory_space<vmem>>, vector<32x64xf32>
    %cst = arith.constant dense<0.000000e+00> : vector<8x64xf32>
    %2 = tpu.matmul %0, %1, %cst {dimension_numbers = #tpu.dot_dimension_numbers<[1], [0], [0], [1], [0, 0, 1, 1], [], []>} : vector<8x32xf32>, vector<32x64xf32>, vector<8x64xf32> -> vector<8x64xf32>
    %c0_3 = arith.constant 0 : index
    %c0_4 = arith.constant 0 : index
    %3 = vector.load %arg3[%c0_3, %c0_4] : memref<1x64xf32, #tpu.memory_space<vmem>>, vector<1x64xf32>
    %4 = vector.broadcast %3 : vector<1x64xf32> to vector<8x64xf32>
    %5 = arith.addf %2, %4 : vector<8x64xf32>
    %cst_5 = arith.constant 0.000000e+00 : f32
    %6 = vector.broadcast %cst_5 : f32 to vector<8x64xf32>
    %7 = arith.maximumf %5, %6 : vector<8x64xf32>
    %c0_6 = arith.constant 0 : index
    %c0_7 = arith.constant 0 : index
    %8 = vector.load %arg4[%c0_6, %c0_7] : memref<64x64xf32, #tpu.memory_space<vmem>>, vector<64x64xf32>
    %cst_8 = arith.constant dense<0.000000e+00> : vector<8x64xf32>
    %9 = tpu.matmul %7, %8, %cst_8 {dimension_numbers = #tpu.dot_dimension_numbers<[1], [0], [0], [1], [0, 0, 1, 1], [], []>} : vector<8x64xf32>, vector<64x64xf32>, vector<8x64xf32> -> vector<8x64xf32>
    %c0_9 = arith.constant 0 : index
    %c0_10 = arith.constant 0 : index
    %10 = vector.load %arg5[%c0_9, %c0_10] : memref<1x64xf32, #tpu.memory_space<vmem>>, vector<1x64xf32>
    %11 = vector.broadcast %10 : vector<1x64xf32> to vector<8x64xf32>
    %12 = arith.addf %9, %11 : vector<8x64xf32>
    %cst_11 = arith.constant 0.000000e+00 : f32
    %13 = vector.broadcast %cst_11 : f32 to vector<8x64xf32>
    %14 = arith.maximumf %12, %13 : vector<8x64xf32>
    %c0_12 = arith.constant 0 : index
    %c0_13 = arith.constant 0 : index
    %15 = vector.load %arg6[%c0_12, %c0_13] : memref<64x32xf32, #tpu.memory_space<vmem>>, vector<64x32xf32>
    %cst_14 = arith.constant dense<0.000000e+00> : vector<8x32xf32>
    %16 = tpu.matmul %14, %15, %cst_14 {dimension_numbers = #tpu.dot_dimension_numbers<[1], [0], [0], [1], [0, 0, 1, 1], [], []>} : vector<8x64xf32>, vector<64x32xf32>, vector<8x32xf32> -> vector<8x32xf32>
    %c0_15 = arith.constant 0 : index
    %c0_16 = arith.constant 0 : index
    %17 = vector.load %arg7[%c0_15, %c0_16] : memref<1x32xf32, #tpu.memory_space<vmem>>, vector<1x32xf32>
    %18 = vector.broadcast %17 : vector<1x32xf32> to vector<8x32xf32>
    %19 = arith.addf %16, %18 : vector<8x32xf32>
    %cst_17 = arith.constant 0.000000e+00 : f32
    %20 = vector.broadcast %cst_17 : f32 to vector<8x32xf32>
    %21 = arith.maximumf %19, %20 : vector<8x32xf32>
    %c0_18 = arith.constant 0 : index
    %c0_19 = arith.constant 0 : index
    %22 = vector.load %arg8[%c0_18, %c0_19] : memref<32x128xf32, #tpu.memory_space<vmem>>, vector<32x128xf32>
    %cst_20 = arith.constant dense<0.000000e+00> : vector<8x128xf32>
    %23 = tpu.matmul %21, %22, %cst_20 {dimension_numbers = #tpu.dot_dimension_numbers<[1], [0], [0], [1], [0, 0, 1, 1], [], []>} : vector<8x32xf32>, vector<32x128xf32>, vector<8x128xf32> -> vector<8x128xf32>
    %c0_21 = arith.constant 0 : index
    %c0_22 = arith.constant 0 : index
    %24 = vector.load %arg9[%c0_21, %c0_22] : memref<1x128xf32, #tpu.memory_space<vmem>>, vector<1x128xf32>
    %25 = vector.broadcast %24 : vector<1x128xf32> to vector<8x128xf32>
    %26 = arith.addf %23, %25 : vector<8x128xf32>
    %27 = arith.negf %26 : vector<8x128xf32>
    %28 = math.exp %27 : vector<8x128xf32>
    %cst_23 = arith.constant 1.000000e+00 : f32
    %29 = vector.broadcast %cst_23 : f32 to vector<8x128xf32>
    %30 = arith.addf %29, %28 : vector<8x128xf32>
    %31 = arith.divf %29, %30 : vector<8x128xf32>
    %c0_24 = arith.constant 0 : index
    %c0_25 = arith.constant 0 : index
    %32 = vector.load %arg10[%c0_24, %c0_25] : memref<8x128xf32, #tpu.memory_space<vmem>>, vector<8x128xf32>
    tpu.vector_store %arg10[%c0_24, %c0_25], %31 {strides = array<i32>} : memref<8x128xf32, #tpu.memory_space<vmem>>, vector<8x128xf32>,
    return
  }
  func.func @transform_0(%arg0: i32) -> (i32, i32) {
    %c0_i32 = arith.constant 0 : i32
    %c0_i32_0 = arith.constant 0 : i32
    return %arg0, %c0_i32 : i32, i32
  }
  func.func @transform_1(%arg0: i32) -> (i32, i32) {
    %c0_i32 = arith.constant 0 : i32
    %c0_i32_0 = arith.constant 0 : i32
    %c0_i32_1 = arith.constant 0 : i32
    return %c0_i32, %c0_i32_0 : i32, i32
  }
  func.func @transform_2(%arg0: i32) -> (i32, i32) {
    %c0_i32 = arith.constant 0 : i32
    %c0_i32_0 = arith.constant 0 : i32
    %c0_i32_1 = arith.constant 0 : i32
    return %c0_i32, %c0_i32_0 : i32, i32
  }
  func.func @transform_3(%arg0: i32) -> (i32, i32) {
    %c0_i32 = arith.constant 0 : i32
    %c0_i32_0 = arith.constant 0 : i32
    %c0_i32_1 = arith.constant 0 : i32
    return %c0_i32, %c0_i32_0 : i32, i32
  }
  func.func @transform_4(%arg0: i32) -> (i32, i32) {
    %c0_i32 = arith.constant 0 : i32
    %c0_i32_0 = arith.constant 0 : i32
    %c0_i32_1 = arith.constant 0 : i32
    return %c0_i32, %c0_i32_0 : i32, i32
  }
  func.func @transform_5(%arg0: i32) -> (i32, i32) {
    %c0_i32 = arith.constant 0 : i32
    %c0_i32_0 = arith.constant 0 : i32
    %c0_i32_1 = arith.constant 0 : i32
    return %c0_i32, %c0_i32_0 : i32, i32
  }
  func.func @transform_6(%arg0: i32) -> (i32, i32) {
    %c0_i32 = arith.constant 0 : i32
    %c0_i32_0 = arith.constant 0 : i32
    %c0_i32_1 = arith.constant 0 : i32
    return %c0_i32, %c0_i32_0 : i32, i32
  }
  func.func @transform_7(%arg0: i32) -> (i32, i32) {
    %c0_i32 = arith.constant 0 : i32
    %c0_i32_0 = arith.constant 0 : i32
    %c0_i32_1 = arith.constant 0 : i32
    return %c0_i32, %c0_i32_0 : i32, i32
  }
  func.func @transform_8(%arg0: i32) -> (i32, i32) {
    %c0_i32 = arith.constant 0 : i32
    %c0_i32_0 = arith.constant 0 : i32
    %c0_i32_1 = arith.constant 0 : i32
    return %c0_i32, %c0_i32_0 : i32, i32
  }
  func.func @transform_9(%arg0: i32) -> (i32, i32) {
    %c0_i32 = arith.constant 0 : i32
    %c0_i32_0 = arith.constant 0 : i32
    return %arg0, %c0_i32 : i32, i32
  }
}

</mosaic_0001>

<llo_original>
// kernel: tpu_custom_call.1
$region0: #{tpu_custom_call.1}
  #allocation0 [shape = 'u32[]', space=smem, size = 0x4, offset = 0x4, fixed_abs, tag = 'smem constant byte address 0x4 - core index']
  #allocation1 [shape = 'u32[144,128]{1,0:T(1,128)}', space=vmem, size = 0x12000, scoped, tag = 'internal scratch']
  %s0 = inlined_call_operand.vmem [shape: f32[8,32], index: 0, kind: input, shape index: {}]
  %s1 = inlined_call_operand.vmem [shape: f32[32,64], index: 1, kind: input, shape index: {}]
  %s2 = inlined_call_operand.vmem [shape: f32[1,64], index: 2, kind: input, shape index: {}]
  %s3 = inlined_call_operand.vmem [shape: f32[64,64], index: 3, kind: input, shape index: {}]
  %s4 = inlined_call_operand.vmem [shape: f32[1,64], index: 4, kind: input, shape index: {}]
  %s5 = inlined_call_operand.vmem [shape: f32[64,32], index: 5, kind: input, shape index: {}]
  %s6 = inlined_call_operand.vmem [shape: f32[1,32], index: 6, kind: input, shape index: {}]
  %s7 = inlined_call_operand.hbm [shape: f32[32,128], index: 7, kind: input, shape index: {}]
  %s8 = inlined_call_operand.vmem [shape: f32[1,128], index: 8, kind: input, shape index: {}]
  %s9 = inlined_call_operand.hbm [shape: f32[8,128], index: 9, kind: output, shape index: {}]
  %s10 = sld [smem:[#allocation0]]
  $region50: #{tpu_custom_call.1} parent=0
    _
  %s12 = ssub.s32 1, %s10
  %s13 = scalar_select 0, %s12, %s10
  $region1: #{tpu_custom_call.1} parent=0
    #allocation2 [shape = 'u8[16384]{0}', space=vmem, size = 0x4000, scoped, tag = 'input window, operand 7, single buffered']
    #allocation3 [shape = 's32[1]{0}', space=sflag, size = 0x4, scoped, tag = 'scoped memory for tpu_custom_call.1']
    #allocation4 [shape = 's32[1]{0}', space=sflag, size = 0x4, scoped, tag = 'scoped memory for tpu_custom_call.1']
    #allocation5 [shape = 'u8[4096]{0}', space=vmem, size = 0x1000, scoped, tag = 'output window, operand 0, single buffered']
    %14 = vsyncpa [#allocation3], 0
    %15 = vsyncpa [#allocation4], 0
    // Predicated region
    $region2: #{tpu_custom_call.1} parent=1 // pred_check
      _
    $region3: #{tpu_custom_call.1} parent=1 // pred_check_branch
      %17 = sbr.rel (0) target = $region5
    $region4: #{tpu_custom_call.1} parent=1 // pred_region
      _
    $region5: #{tpu_custom_call.1} parent=1 // pred_fallthru
      _
    // Predicated region
    $region6: #{tpu_custom_call.1} parent=1 // pred_check
      _
    $region7: #{tpu_custom_call.1} parent=1 // pred_check_branch
      %19 = sbr.rel (0) target = $region9
    $region8: #{tpu_custom_call.1} parent=1 // pred_region
      _
    $region9: #{tpu_custom_call.1} parent=1 // pred_fallthru
      _
    // Predicated region
    $region10: #{tpu_custom_call.1} parent=1 // pred_check
      _
    $region11: #{tpu_custom_call.1} parent=1 // pred_check_branch
      %21 = sbr.rel (0) target = $region13
    $region12: #{tpu_custom_call.1} parent=1 // pred_region
      _
    $region13: #{tpu_custom_call.1} parent=1 // pred_fallthru
      _
    // Predicated region
    $region14: #{tpu_custom_call.1} parent=1 // pred_check
      _
    $region15: #{tpu_custom_call.1} parent=1 // pred_check_branch
      %23 = sbr.rel (0) target = $region17
    $region16: #{tpu_custom_call.1} parent=1 // pred_region
      _
    $region17: #{tpu_custom_call.1} parent=1 // pred_fallthru
      _
    // Predicated region
    $region18: #{tpu_custom_call.1} parent=1 // pred_check
      _
    $region19: #{tpu_custom_call.1} parent=1 // pred_check_branch
      %25 = sbr.rel (0) target = $region21
    $region20: #{tpu_custom_call.1} parent=1 // pred_region
      _
    $region21: #{tpu_custom_call.1} parent=1 // pred_fallthru
      _
    // Predicated region
    $region22: #{tpu_custom_call.1} parent=1 // pred_check
      _
    $region23: #{tpu_custom_call.1} parent=1 // pred_check_branch
      %27 = sbr.rel (0) target = $region25
    $region24: #{tpu_custom_call.1} parent=1 // pred_region
      _
    $region25: #{tpu_custom_call.1} parent=1 // pred_fallthru
      _
    // Predicated region
    $region26: #{tpu_custom_call.1} parent=1 // pred_check
      _
    $region27: #{tpu_custom_call.1} parent=1 // pred_check_branch
      %29 = sbr.rel (0) target = $region29
    $region28: #{tpu_custom_call.1} parent=1 // pred_region
      _
    $region29: #{tpu_custom_call.1} parent=1 // pred_fallthru
      _
    // Predicated region
    $region30: #{tpu_custom_call.1} parent=1 // pred_check
      _
    $region31: #{tpu_custom_call.1} parent=1 // pred_check_branch
      %31 = sbr.rel (0) target = $region33
    $region32: #{tpu_custom_call.1} parent=1 // pred_region
      %s33 = ssub.s32 512, 512
      %34 = vsyncadd [#allocation3], %s33
      %s35 = sshll.u32 [#allocation2], 4
      %s36 = int_to_ptr.vmem [resolvable:$true] %s35
      %41 = dma.hbm_to_vmem [thread:$0]  %s7, 512, %s36, [#allocation3], 128, 128, 8
    $region33: #{tpu_custom_call.1} parent=1 // pred_fallthru
      _
    // Predicated region
    $region34: #{tpu_custom_call.1} parent=1 // pred_check
      _
    $region35: #{tpu_custom_call.1} parent=1 // pred_check_branch
      %43 = sbr.rel (0) target = $region37
    $region36: #{tpu_custom_call.1} parent=1 // pred_region
      _
    $region37: #{tpu_custom_call.1} parent=1 // pred_fallthru
      _
    // Predicated region
    $region38: #{tpu_custom_call.1} parent=1 // pred_check
      _
    $region39: #{tpu_custom_call.1} parent=1 // pred_check_branch
      %45 = sbr.rel (0) target = $region41
    $region40: #{tpu_custom_call.1} parent=1 // pred_region
      %46 = dma.done [#allocation3], 512
    $region41: #{tpu_custom_call.1} parent=1 // pred_fallthru
      _
    %v47 = vld [vmem:[%s0] sm:$0xff]
    %v48 = vld [vmem:[%s1] sm:$0xff]
    %v49 = vld [vmem:[%s1 + $0x8] sm:$0xff]
    %v50 = vld [vmem:[%s1 + $0x10] sm:$0xff]
    %v51 = vld [vmem:[%s1 + $0x18] sm:$0xff]
    %v52 = vld [vmem:[%s2] sm:$0x1]
    %v54 = vlaneseq
    %v55 = vshrl.u32 %v54, 7
    %v56 = vsub.s32 0, %v55
    %v57 = vrot.slane %v52, %v56
    %vm59 = vcmask 261120
    %v61 = vsel %vm59, %v47, 0
    %63 = vmatprep.subr.mxu0 0.0
    %64 = vmatpush1.msra.mxu0 %v48
    %65 = vmatprep.subr.mxu0 0.0
    %66 = vmatpush1.msra.mxu0 %v49
    %67 = vmatprep.subr.mxu0 0.0
    %68 = vmatpush1.msra.mxu0 %v50
    %69 = vmatprep.subr.mxu0 0.0
    %70 = vmatpush1.msra.mxu0 %v51
    %71 = vmatprep.subr.mxu0 0.0
    %72 = vmatpush1.msra.mxu0 0.0
    %73 = vmatprep.subr.mxu0 0.0
    %74 = vmatpush1.msra.mxu0 0.0
    %75 = vmatprep.subr.mxu0 0.0
    %76 = vmatpush1.msra.mxu0 0.0
    %77 = vmatprep.subr.mxu0 0.0
    %78 = vmatpush1.msra.mxu0 0.0
    %79 = vmatprep.subr.mxu0 0.0
    %80 = vmatpush1.msra.mxu0 0.0
    %81 = vmatprep.subr.mxu0 0.0
    %82 = vmatpush1.msra.mxu0 0.0
    %83 = vmatprep.subr.mxu0 0.0
    %84 = vmatpush1.msra.mxu0 0.0
    %85 = vmatprep.subr.mxu0 0.0
    %86 = vmatpush1.msra.mxu0 0.0
    %87 = vmatprep.subr.mxu0 0.0
    %88 = vmatpush1.msra.mxu0 0.0
    %89 = vmatprep.subr.mxu0 0.0
    %90 = vmatpush1.msra.mxu0 0.0
    %91 = vmatprep.subr.mxu0 0.0
    %92 = vmatpush1.msra.mxu0 0.0
    %93 = vmatprep.subr.mxu0 0.0
    %94 = vmatpush1.msra.mxu0 0.0
    %95 = vmatprep.subr.mxu0 0.0
    %96 = vmatpush1.msra.mxu0 0.0
    %97 = vmatprep.subr.mxu0 0.0
    %98 = vmatpush1.msra.mxu0 0.0
    %99 = vmatprep.subr.mxu0 0.0
    %100 = vmatpush1.msra.mxu0 0.0
    %101 = vmatprep.subr.mxu0 0.0
    %102 = vmatpush1.msra.mxu0 0.0
    %103 = vmatprep.subr.mxu0 0.0
    %104 = vmatpush1.msra.mxu0 0.0
    %105 = vmatprep.subr.mxu0 0.0
    %106 = vmatpush1.msra.mxu0 0.0
    %107 = vmatprep.subr.mxu0 0.0
    %108 = vmatpush1.msra.mxu0 0.0
    %109 = vmatprep.subr.mxu0 0.0
    %110 = vmatpush1.msra.mxu0 0.0
    %111 = vmatprep.subr.mxu0 0.0
    %112 = vmatpush1.msra.mxu0 0.0
    %113 = vmatprep.subr.mxu0 0.0
    %114 = vmatpush1.msra.mxu0 0.0
    %115 = vmatprep.subr.mxu0 0.0
    %116 = vmatpush1.msra.mxu0 0.0
    %117 = vmatprep.subr.mxu0 0.0
    %118 = vmatpush1.msra.mxu0 0.0
    %119 = vmatprep.subr.mxu0 0.0
    %120 = vmatpush1.msra.mxu0 0.0
    %121 = vmatprep.subr.mxu0 0.0
    %122 = vmatpush1.msra.mxu0 0.0
    %123 = vmatprep.subr.mxu0 0.0
    %124 = vmatpush1.msra.mxu0 0.0
    %125 = vmatprep.subr.mxu0 0.0
    %126 = vmatpush1.msra.mxu0 0.0
    %127 = vmatprep.mubr.f32.mxu0 0.0
    %128 = vmatmul.mubr.f32.gmra.mrb[0].mxu0 %v61
    %v129 = vpop.f32.mrb[0].mxu0
    %v130 = vadd.f32 %v57, %v129
    %v131 = vpop.f32.mrb[0].mxu0
    %132 = vdwg.mxu0
    %v133 = vmax.f32 %v130, 0.0
    %v134 = vld [vmem:[%s3] sm:$0xff]
    %v135 = vld [vmem:[%s3 + $0x8] sm:$0xff]
    %v136 = vld [vmem:[%s3 + $0x10] sm:$0xff]
    %v137 = vld [vmem:[%s3 + $0x18] sm:$0xff]
    %v138 = vld [vmem:[%s3 + $0x20] sm:$0xff]
    %v139 = vld [vmem:[%s3 + $0x28] sm:$0xff]
    %v140 = vld [vmem:[%s3 + $0x30] sm:$0xff]
    %v141 = vld [vmem:[%s3 + $0x38] sm:$0xff]
    %v142 = vld [vmem:[%s4] sm:$0x1]
    %v144 = vlaneseq
    %v145 = vshrl.u32 %v144, 7
    %v146 = vsub.s32 0, %v145
    %v147 = vrot.slane %v142, %v146
    %vm149 = vcmask 523264
    %v151 = vsel %vm149, %v133, 0
    %153 = vmatprep.subr.mxu0 0.0
    %154 = vmatpush1.msra.mxu0 %v134
    %155 = vmatprep.subr.mxu0 0.0
    %156 = vmatpush1.msra.mxu0 %v135
    %157 = vmatprep.subr.mxu0 0.0
    %158 = vmatpush1.msra.mxu0 %v136
    %159 = vmatprep.subr.mxu0 0.0
    %160 = vmatpush1.msra.mxu0 %v137
    %161 = vmatprep.subr.mxu0 0.0
    %162 = vmatpush1.msra.mxu0 %v138
    %163 = vmatprep.subr.mxu0 0.0
    %164 = vmatpush1.msra.mxu0 %v139
    %165 = vmatprep.subr.mxu0 0.0
    %166 = vmatpush1.msra.mxu0 %v140
    %167 = vmatprep.subr.mxu0 0.0
    %168 = vmatpush1.msra.mxu0 %v141
    %169 = vmatprep.subr.mxu0 0.0
    %170 = vmatpush1.msra.mxu0 0.0
    %171 = vmatprep.subr.mxu0 0.0
    %172 = vmatpush1.msra.mxu0 0.0
    %173 = vmatprep.subr.mxu0 0.0
    %174 = vmatpush1.msra.mxu0 0.0
    %175 = vmatprep.subr.mxu0 0.0
    %176 = vmatpush1.msra.mxu0 0.0
    %177 = vmatprep.subr.mxu0 0.0
    %178 = vmatpush1.msra.mxu0 0.0
    %179 = vmatprep.subr.mxu0 0.0
    %180 = vmatpush1.msra.mxu0 0.0
    %181 = vmatprep.subr.mxu0 0.0
    %182 = vmatpush1.msra.mxu0 0.0
    %183 = vmatprep.subr.mxu0 0.0
    %184 = vmatpush1.msra.mxu0 0.0
    %185 = vmatprep.subr.mxu0 0.0
    %186 = vmatpush1.msra.mxu0 0.0
    %187 = vmatprep.subr.mxu0 0.0
    %188 = vmatpush1.msra.mxu0 0.0
    %189 = vmatprep.subr.mxu0 0.0
    %190 = vmatpush1.msra.mxu0 0.0
    %191 = vmatprep.subr.mxu0 0.0
    %192 = vmatpush1.msra.mxu0 0.0
    %193 = vmatprep.subr.mxu0 0.0
    %194 = vmatpush1.msra.mxu0 0.0
    %195 = vmatprep.subr.mxu0 0.0
    %196 = vmatpush1.msra.mxu0 0.0
    %197 = vmatprep.subr.mxu0 0.0
    %198 = vmatpush1.msra.mxu0 0.0
    %199 = vmatprep.subr.mxu0 0.0
    %200 = vmatpush1.msra.mxu0 0.0
    %201 = vmatprep.subr.mxu0 0.0
    %202 = vmatpush1.msra.mxu0 0.0
    %203 = vmatprep.subr.mxu0 0.0
    %204 = vmatpush1.msra.mxu0 0.0
    %205 = vmatprep.subr.mxu0 0.0
    %206 = vmatpush1.msra.mxu0 0.0
    %207 = vmatprep.subr.mxu0 0.0
    %208 = vmatpush1.msra.mxu0 0.0
    %209 = vmatprep.subr.mxu0 0.0
    %210 = vmatpush1.msra.mxu0 0.0
    %211 = vmatprep.subr.mxu0 0.0
    %212 = vmatpush1.msra.mxu0 0.0
    %213 = vmatprep.subr.mxu0 0.0
    %214 = vmatpush1.msra.mxu0 0.0
    %215 = vmatprep.subr.mxu0 0.0
    %216 = vmatpush1.msra.mxu0 0.0
    %217 = vmatprep.mubr.f32.mxu0 0.0
    %218 = vmatmul.mubr.f32.gmra.mrb[0].mxu0 %v151
    %v219 = vpop.f32.mrb[0].mxu0
    %v220 = vadd.f32 %v147, %v219
    %v221 = vpop.f32.mrb[0].mxu0
    %222 = vdwg.mxu0
    %v223 = vmax.f32 %v220, 0.0
    %v224 = vld [vmem:[%s5] sm:$0xff]
    %v225 = vld [vmem:[%s5 + $0x8] sm:$0xff]
    %v226 = vld [vmem:[%s5 + $0x10] sm:$0xff]
    %v227 = vld [vmem:[%s5 + $0x18] sm:$0xff]
    %v228 = vld [vmem:[%s5 + $0x20] sm:$0xff]
    %v229 = vld [vmem:[%s5 + $0x28] sm:$0xff]
    %v230 = vld [vmem:[%s5 + $0x30] sm:$0xff]
    %v231 = vld [vmem:[%s5 + $0x38] sm:$0xff]
    %v232 = vld [vmem:[%s6] sm:$0x1]
    %v234 = vlaneseq
    %v235 = vshrl.u32 %v234, 7
    %v236 = vsub.s32 0, %v235
    %v237 = vrot.slane %v232, %v236
    %v240 = vsel %vm149, %v223, 0
    %242 = vmatprep.subr.mxu0 0.0
    %243 = vmatpush1.msra.mxu0 %v224
    %244 = vmatprep.subr.mxu0 0.0
    %245 = vmatpush1.msra.mxu0 %v225
    %246 = vmatprep.subr.mxu0 0.0
    %247 = vmatpush1.msra.mxu0 %v226
    %248 = vmatprep.subr.mxu0 0.0
    %249 = vmatpush1.msra.mxu0 %v227
    %250 = vmatprep.subr.mxu0 0.0
    %251 = vmatpush1.msra.mxu0 %v228
    %252 = vmatprep.subr.mxu0 0.0
    %253 = vmatpush1.msra.mxu0 %v229
    %254 = vmatprep.subr.mxu0 0.0
    %255 = vmatpush1.msra.mxu0 %v230
    %256 = vmatprep.subr.mxu0 0.0
    %257 = vmatpush1.msra.mxu0 %v231
    %258 = vmatprep.subr.mxu0 0.0
    %259 = vmatpush1.msra.mxu0 0.0
    %260 = vmatprep.subr.mxu0 0.0
    %261 = vmatpush1.msra.mxu0 0.0
    %262 = vmatprep.subr.mxu0 0.0
    %263 = vmatpush1.msra.mxu0 0.0
    %264 = vmatprep.subr.mxu0 0.0
    %265 = vmatpush1.msra.mxu0 0.0
    %266 = vmatprep.subr.mxu0 0.0
    %267 = vmatpush1.msra.mxu0 0.0
    %268 = vmatprep.subr.mxu0 0.0
    %269 = vmatpush1.msra.mxu0 0.0
    %270 = vmatprep.subr.mxu0 0.0
    %271 = vmatpush1.msra.mxu0 0.0
    %272 = vmatprep.subr.mxu0 0.0
    %273 = vmatpush1.msra.mxu0 0.0
    %274 = vmatprep.subr.mxu0 0.0
    %275 = vmatpush1.msra.mxu0 0.0
    %276 = vmatprep.subr.mxu0 0.0
    %277 = vmatpush1.msra.mxu0 0.0
    %278 = vmatprep.subr.mxu0 0.0
    %279 = vmatpush1.msra.mxu0 0.0
    %280 = vmatprep.subr.mxu0 0.0
    %281 = vmatpush1.msra.mxu0 0.0
    %282 = vmatprep.subr.mxu0 0.0
    %283 = vmatpush1.msra.mxu0 0.0
    %284 = vmatprep.subr.mxu0 0.0
    %285 = vmatpush1.msra.mxu0 0.0
    %286 = vmatprep.subr.mxu0 0.0
    %287 = vmatpush1.msra.mxu0 0.0
    %288 = vmatprep.subr.mxu0 0.0
    %289 = vmatpush1.msra.mxu0 0.0
    %290 = vmatprep.subr.mxu0 0.0
    %291 = vmatpush1.msra.mxu0 0.0
    %292 = vmatprep.subr.mxu0 0.0
    %293 = vmatpush1.msra.mxu0 0.0
    %294 = vmatprep.subr.mxu0 0.0
    %295 = vmatpush1.msra.mxu0 0.0
    %296 = vmatprep.subr.mxu0 0.0
    %297 = vmatpush1.msra.mxu0 0.0
    %298 = vmatprep.subr.mxu0 0.0
    %299 = vmatpush1.msra.mxu0 0.0
    %300 = vmatprep.subr.mxu0 0.0
    %301 = vmatpush1.msra.mxu0 0.0
    %302 = vmatprep.subr.mxu0 0.0
    %303 = vmatpush1.msra.mxu0 0.0
    %304 = vmatprep.subr.mxu0 0.0
    %305 = vmatpush1.msra.mxu0 0.0
    %306 = vmatprep.mubr.f32.mxu0 0.0
    %307 = vmatmul.mubr.f32.gmra.mrb[0].mxu0 %v240
    %v308 = vpop.f32.mrb[0].mxu0
    %v309 = vadd.f32 %v237, %v308
    %v310 = vpop.f32.mrb[0].mxu0
    %311 = vdwg.mxu0
    %v312 = vmax.f32 %v309, 0.0
    %v313 = vld [vmem:[#allocation2] sm:$0xff]
    %v314 = vld [vmem:[#allocation2 + $0x8] sm:$0xff]
    %v315 = vld [vmem:[#allocation2 + $0x10] sm:$0xff]
    %v316 = vld [vmem:[#allocation2 + $0x18] sm:$0xff]
    %v317 = vld [vmem:[%s8] sm:$0x1]
    %v319 = vlaneseq
    %v320 = vshrl.u32 %v319, 7
    %v321 = vsub.s32 0, %v320
    %v322 = vrot.slane %v317, %v321
    %v325 = vsel %vm59, %v312, 0
    %327 = vmatprep.subr.mxu0 0.0
    %328 = vmatpush1.msra.mxu0 %v313
    %329 = vmatprep.subr.mxu0 0.0
    %330 = vmatpush1.msra.mxu0 %v314
    %331 = vmatprep.subr.mxu0 0.0
    %332 = vmatpush1.msra.mxu0 %v315
    %333 = vmatprep.subr.mxu0 0.0
    %334 = vmatpush1.msra.mxu0 %v316
    %335 = vmatprep.subr.mxu0 0.0
    %336 = vmatpush1.msra.mxu0 0.0
    %337 = vmatprep.subr.mxu0 0.0
    %338 = vmatpush1.msra.mxu0 0.0
    %339 = vmatprep.subr.mxu0 0.0
    %340 = vmatpush1.msra.mxu0 0.0
    %341 = vmatprep.subr.mxu0 0.0
    %342 = vmatpush1.msra.mxu0 0.0
    %343 = vmatprep.subr.mxu0 0.0
    %344 = vmatpush1.msra.mxu0 0.0
    %345 = vmatprep.subr.mxu0 0.0
    %346 = vmatpush1.msra.mxu0 0.0
    %347 = vmatprep.subr.mxu0 0.0
    %348 = vmatpush1.msra.mxu0 0.0
    %349 = vmatprep.subr.mxu0 0.0
    %350 = vmatpush1.msra.mxu0 0.0
    %351 = vmatprep.subr.mxu0 0.0
    %352 = vmatpush1.msra.mxu0 0.0
    %353 = vmatprep.subr.mxu0 0.0
    %354 = vmatpush1.msra.mxu0 0.0
    %355 = vmatprep.subr.mxu0 0.0
    %356 = vmatpush1.msra.mxu0 0.0
    %357 = vmatprep.subr.mxu0 0.0
    %358 = vmatpush1.msra.mxu0 0.0
    %359 = vmatprep.subr.mxu0 0.0
    %360 = vmatpush1.msra.mxu0 0.0
    %361 = vmatprep.subr.mxu0 0.0
    %362 = vmatpush1.msra.mxu0 0.0
    %363 = vmatprep.subr.mxu0 0.0
    %364 = vmatpush1.msra.mxu0 0.0
    %365 = vmatprep.subr.mxu0 0.0
    %366 = vmatpush1.msra.mxu0 0.0
    %367 = vmatprep.subr.mxu0 0.0
    %368 = vmatpush1.msra.mxu0 0.0
    %369 = vmatprep.subr.mxu0 0.0
    %370 = vmatpush1.msra.mxu0 0.0
    %371 = vmatprep.subr.mxu0 0.0
    %372 = vmatpush1.msra.mxu0 0.0
    %373 = vmatprep.subr.mxu0 0.0
    %374 = vmatpush1.msra.mxu0 0.0
    %375 = vmatprep.subr.mxu0 0.0
    %376 = vmatpush1.msra.mxu0 0.0
    %377 = vmatprep.subr.mxu0 0.0
    %378 = vmatpush1.msra.mxu0 0.0
    %379 = vmatprep.subr.mxu0 0.0
    %380 = vmatpush1.msra.mxu0 0.0
    %381 = vmatprep.subr.mxu0 0.0
    %382 = vmatpush1.msra.mxu0 0.0
    %383 = vmatprep.subr.mxu0 0.0
    %384 = vmatpush1.msra.mxu0 0.0
    %385 = vmatprep.subr.mxu0 0.0
    %386 = vmatpush1.msra.mxu0 0.0
    %387 = vmatprep.subr.mxu0 0.0
    %388 = vmatpush1.msra.mxu0 0.0
    %389 = vmatprep.subr.mxu0 0.0
    %390 = vmatpush1.msra.mxu0 0.0
    %391 = vmatprep.mubr.f32.mxu0 0.0
    %392 = vmatmul.mubr.f32.gmra.mrb[0].mxu0 %v325
    %v393 = vpop.f32.mrb[0].mxu0
    %v394 = vadd.f32 %v322, %v393
    %v395 = vpop.f32.mrb[0].mxu0
    %396 = vdwg.mxu0
    %v397 = vxor.u32 %v394, 2147483648
    %v398 = vmul.f32 %v397, 1.442695
    %v399 = vpow.pop %v398
    %v400 = vadd.f32 %v399, 1.0
    %v401 = vrcp.pop %v400
    %v402 = vmul.f32 1.0, %v401
    %403 = vst [vmem:[#allocation5] sm:$0xff] %v402
    // Predicated region
    $region42: #{tpu_custom_call.1} parent=1 // pred_check
      _
    $region43: #{tpu_custom_call.1} parent=1 // pred_check_branch
      %405 = sbr.rel (0) target = $region45
    $region44: #{tpu_custom_call.1} parent=1 // pred_region
      %s407 = ssub.s32 128, 128
      %408 = vsyncadd [#allocation4], %s407
      %s410 = sshll.u32 [#allocation5], 4
      %s411 = int_to_ptr.vmem [resolvable:$true] %s410
      %413 = dma.vmem_to_hbm [thread:$0]  %s411, 128, %s9, [#allocation4]
    $region45: #{tpu_custom_call.1} parent=1 // pred_fallthru
      _
    // Predicated region
    $region46: #{tpu_custom_call.1} parent=1 // pred_check
      _
    $region47: #{tpu_custom_call.1} parent=1 // pred_check_branch
      %415 = sbr.rel (0) target = $region49
    $region48: #{tpu_custom_call.1} parent=1 // pred_region
      %416 = dma.done [#allocation4], 128
    $region49: #{tpu_custom_call.1} parent=1 // pred_fallthru
      _
    %417 = vsyncpa [#allocation3], 1
    %418 = vsyncpa [#allocation4], 1

</llo_original>
